<compile_context>
chip_gen: v5e
topology: v5e:2x2
jax: 0.10.0
libtpu: 0.0.40
codegen_flags: <defaults>
</compile_context>

<pallas_src>
import functools

import jax
import jax.numpy as jnp
from jax.experimental import pallas as pl
from jax.experimental.pallas import tpu as pltpu


def _cdiv(a, b):
    return -(-a // b)


def _round_up(a, b):
    return _cdiv(a, b) * b


def fe_pool_kernel(seg_ref, x_ref, w1_ref, b1_ref, w2_ref, b2_ref,
                   part_ref, acc_ref):
    """One (D_in, TILE_N) column-block: feature extractor + segment-sum pooling."""
    t = pl.program_id(1)

    @pl.when(t == 0)
    def _init():
        acc_ref[...] = jnp.zeros_like(acc_ref)

    # Feature extractor in transposed (lane-dense) orientation:
    #   h^T = relu(W2 @ relu(W1 @ x^T + b1) + b2)   with N in the lane dimension.
    x = x_ref[...].astype(jnp.bfloat16)                         # in-kernel cast; f32 streamed
    h = jnp.dot(w1_ref[...], x, preferred_element_type=jnp.float32)        # [F1, TILE_N]
    h = jnp.maximum(h + b1_ref[...], 0.0)
    h = jnp.dot(w2_ref[...], h.astype(jnp.bfloat16),
                preferred_element_type=jnp.float32)                         # [F2, TILE_N]
    h = jnp.maximum(h + b2_ref[...], 0.0)

    # Mask padded / out-of-bounds columns (seg id < 0) BEFORE pooling so that any garbage
    # (NaN/Inf) in a partial tail block cannot leak through 0 * NaN.
    seg = seg_ref[...]                                          # [1, TILE_N] int32
    h = jnp.where(seg >= 0, h, 0.0)

    # Segment-sum pooling via B masked lane reductions (B is tiny & static here).
    # TODO(synk): for large B switch to a bf16 one-hot MXU matmul instead.
    B = acc_ref.shape[1]
    for b in range(B):
        m = (seg == b).astype(jnp.float32)                      # [1, TILE_N]
        acc_ref[:, b:b + 1] += jnp.sum(h * m, axis=1, keepdims=True)

    # Emit this core's partial segment sums once its tile stream is done.
    @pl.when(t == pl.num_programs(1) - 1)
    def _emit():
        part_ref[0] = acc_ref[...]


@functools.partial(jax.jit, static_argnames=("tile_n", "num_cores"))
def reinforce_forward_batch(bulk_t, seg_ids, counts, params, *, tile_n=8192, num_cores=2):
    """bulk_t: [D_in, N] f32 = concat(representations, axis=0).T (lane-major, from caller);
       seg_ids: [N] int32 row -> dataset id; counts: [B] f32 rows per dataset."""
    assert tile_n % 128 == 0, "tile_n must be a multiple of 128 (lane-aligned)"
    assert num_cores >= 1
    w1, b1, w2, b2, wp1, bp1, wp2, bp2 = params   # torch nn.Linear layout: W [out, in], b [out]
    D_in, N = bulk_t.shape
    B = int(counts.shape[0])
    F1, F2 = w1.shape[0], w2.shape[0]
    assert w1.shape[1] == D_in and w2.shape[1] == F1 and wp1.shape[1] == F2

    # Clamp the tile to the (lane-rounded) data size so tiny inputs don't burn a full tile.
    tile = min(tile_n, _round_up(N, 128))
    n_tiles = _cdiv(N, tile)                    # real column-blocks of bulk_t
    tpc = _cdiv(n_tiles, num_cores)             # tiles per core (last core may get a phantom tile)
    n_pad = num_cores * tpc * tile

    # Only the tiny int32 seg vector is padded; bulk_t streams as-is (no pad / cast round trip).
    seg_p = jnp.pad(seg_ids.astype(jnp.int32), (0, n_pad - N),
                    constant_values=-1).reshape(1, n_pad)

    # torch Linear weights are already [out, in] == the transposed layout the kernel wants.
    w1t = w1.astype(jnp.bfloat16)
    w2t = w2.astype(jnp.bfloat16)
    b1c = b1.reshape(F1, 1)
    b2c = b2.reshape(F2, 1)

    last_blk = n_tiles - 1
    const = lambda c, t: (0, 0)

    grid_spec = pltpu.PrefetchScalarGridSpec(
        num_scalar_prefetch=0,
        grid=(num_cores, tpc),
        in_specs=[
            pl.BlockSpec((1, tile), lambda c, t: (0, c * tpc + t)),          # seg ids (padded)
            # bulk column-block; phantom tiles clamp to the last real block (their seg ids are
            # all -1 so they contribute nothing).  If DMA is still exposed at large tile_n,
            # add `pipeline_mode=pl.Buffered(3)` here (costs one extra tile of VMEM).
            pl.BlockSpec((D_in, tile),
                         lambda c, t: (0, jnp.minimum(c * tpc + t, last_blk))),
            pl.BlockSpec((F1, D_in), const), pl.BlockSpec((F1, 1), const),
            pl.BlockSpec((F2, F1), const), pl.BlockSpec((F2, 1), const),
        ],
        out_specs=pl.BlockSpec((1, F2, B), lambda c, t: (c, 0, 0)),          # per-core partials
        scratch_shapes=[pltpu.VMEM((F2, B), jnp.float32)],
    )

    n_rows = num_cores * tpc * tile
    flops = 2 * n_rows * (D_in * F1 + F1 * F2) + 2 * B * F2 * n_rows
    bytes_accessed = (4 * N * D_in + 4 * n_pad
                      + 4 * (F1 * D_in + F1 + F2 * F1 + F2)
                      + 4 * num_cores * F2 * B)
    cost = pl.CostEstimate(flops=int(flops), transcendentals=0,
                           bytes_accessed=int(bytes_accessed))

    parts = pl.pallas_call(
        fe_pool_kernel,
        out_shape=jax.ShapeDtypeStruct((num_cores, F2, B), jnp.float32),
        grid_spec=grid_spec,
        compiler_params=pltpu.CompilerParams(
            dimension_semantics=("parallel", "arbitrary"),   # split tiles across v7x's 2 TCs
            vmem_limit_bytes=32 << 20,
        ),
        cost_estimate=cost,
    )(seg_p, bulk_t, w1t, b1c, w2t, b2c)                     # [num_cores, F2, B]

    # Tiny epilogue (B x F = 2 x 32): combine per-core partials, mean, prob extractor,
    # exact softmax.  XLA fuses this into one small op following the kernel.
    pooled = jnp.sum(parts, axis=0).T                        # [B, F2] segment sums
    inv_counts = jnp.where(counts > 0, 1.0 / counts.astype(jnp.float32), 0.0)
    feat = pooled * inv_counts[:, None]                      # aggregator: per-dataset mean
    g = jnp.maximum(feat @ wp1.T + bp1, 0.0)
    z = jnp.maximum(g @ wp2.T + bp2, 0.0)
    return jax.nn.softmax(z, axis=-1)                        # exact division


def make_params(key, fe_arch, prob_arch, num_transforms):
    """Deterministic synthetic weights in torch nn.Linear layout (W: [out, in], b: [out])."""
    dims = []
    for i in range(len(fe_arch) - 1):
        dims.append((fe_arch[i], fe_arch[i + 1]))
    for i in range(len(prob_arch) - 1):
        dims.append((prob_arch[i], prob_arch[i + 1]))
    dims.append((prob_arch[-1], num_transforms))

    params = []
    for (din, dout) in dims:
        key, kw, kb = jax.random.split(key, 3)
        bound = 1.0 / (din ** 0.5)
        params.append(jax.random.uniform(kw, (dout, din), jnp.float32, -bound, bound))
        params.append(jax.random.uniform(kb, (dout,), jnp.float32, -bound, bound))
    return tuple(params)


def reference_forward(bulk_t, seg_ids, counts, params):
    """Pure-JAX reference with the same bf16-operand / f32-accumulate feature extractor."""
    w1, b1, w2, b2, wp1, bp1, wp2, bp2 = params
    x = bulk_t.T                                             # [N, D_in]
    bf = jnp.bfloat16
    h = jnp.maximum(jnp.dot(x.astype(bf), w1.T.astype(bf),
                            preferred_element_type=jnp.float32) + b1, 0.0)
    h = jnp.maximum(jnp.dot(h.astype(bf), w2.T.astype(bf),
                            preferred_element_type=jnp.float32) + b2, 0.0)
    B = counts.shape[0]
    onehot = (seg_ids[None, :] == jnp.arange(B)[:, None]).astype(jnp.float32)
    feat = (onehot @ h) / counts[:, None].astype(jnp.float32)
    g = jnp.maximum(feat @ wp1.T + bp1, 0.0)
    z = jnp.maximum(g @ wp2.T + bp2, 0.0)
    return jax.nn.softmax(z, axis=-1)


if __name__ == "__main__":
    # Small architecture consistent with the module:
    #   fe_arch = (16, 32, 32), prob_arch = (32, 32), num_transforms = 8
    #   (fe_arch[-1] must equal prob_arch[0] for the torch module to be well-formed)
    fe_arch = (16, 32, 32)
    prob_arch = (32, 32)
    num_transforms = 8
    assert fe_arch[-1] == prob_arch[0]

    key = jax.random.PRNGKey(0)
    key, kdata = jax.random.split(key)

    rows = (400, 240)                      # two "datasets"; N = 640 stacked rows
    B = len(rows)
    D_in = fe_arch[0]
    N = sum(rows)
    # Caller provides the lane-major layout once: concat(representations, axis=0).T
    bulk_t = jax.random.normal(kdata, (D_in, N), jnp.float32)
    seg_ids = jnp.concatenate(
        [jnp.full((r,), i, jnp.int32) for i, r in enumerate(rows)])   # row -> dataset id
    counts = jnp.array(rows, jnp.float32)

    params = make_params(key, fe_arch, prob_arch, num_transforms)
    ref = reference_forward(bulk_t, seg_ids, counts, params)

    # Small tile -> exercises multi-tile accumulation, the 2-way core split and the clamped
    # phantom tile (5 real tiles split over 2 cores).
    out = reinforce_forward_batch(bulk_t, seg_ids, counts, params, tile_n=128)
    out = jax.block_until_ready(out)
    assert out.shape == (B, num_transforms)
    assert not jnp.isnan(out).any()
    assert jnp.allclose(out, ref, atol=1e-3, rtol=1e-3), (out, ref)
    assert jnp.allclose(jnp.sum(out, axis=-1), 1.0, atol=1e-5)

    # Default (large) tile -> auto-clamped to the data size, single tile per core.
    out2 = reinforce_forward_batch(bulk_t, seg_ids, counts, params)
    out2 = jax.block_until_ready(out2)
    assert jnp.allclose(out2, ref, atol=1e-3, rtol=1e-3), (out2, ref)

    # forward() (single node) would be forward_batch(...)[0, :]
    _single = out[0, :]

    print("KERNEL_OK")
</pallas_src>

<mosaic_0001>
module attributes {stable_mosaic.version = 11 : i64} {
  func.func @fe_pool_kernel(%arg0: i32, %arg1: i32, %arg2: memref<1x128xi32, #tpu.memory_space<vmem>>, %arg3: memref<16x128xf32, #tpu.memory_space<vmem>>, %arg4: memref<32x16xbf16, #tpu.memory_space<vmem>>, %arg5: memref<32x1xf32, #tpu.memory_space<vmem>>, %arg6: memref<32x32xbf16, #tpu.memory_space<vmem>>, %arg7: memref<32x1xf32, #tpu.memory_space<vmem>>, %arg8: memref<1x32x2xf32, #tpu.memory_space<vmem>>, %arg9: memref<32x2xf32, #tpu.memory_space<vmem>>) attributes {dimension_semantics = [#tpu.dimension_semantics<parallel>, #tpu.dimension_semantics<arbitrary>], iteration_bounds = array<i64: 2, 3>, scalar_prefetch = 0 : i64, scratch_operands = 1 : i64, tpu.core_type = #tpu.core_type<tc>, window_params = [{transform_indices = @transform_0, window_bounds = array<i64: 1, 128>}, {transform_indices = @transform_1, window_bounds = array<i64: 16, 128>}, {pipeline_mode = #tpu.pipeline_mode<synchronous>, transform_indices = @transform_2, window_bounds = array<i64: 32, 16>}, {pipeline_mode = #tpu.pipeline_mode<synchronous>, transform_indices = @transform_3, window_bounds = array<i64: 32, 1>}, {pipeline_mode = #tpu.pipeline_mode<synchronous>, transform_indices = @transform_4, window_bounds = array<i64: 32, 32>}, {pipeline_mode = #tpu.pipeline_mode<synchronous>, transform_indices = @transform_5, window_bounds = array<i64: 32, 1>}, {transform_indices = @transform_6, window_bounds = array<i64: 1, 32, 2>}]} {
    %c0_i32 = arith.constant 0 : i32
    %0 = arith.cmpi eq, %arg1, %c0_i32 : i32
    %1 = arith.extui %0 : i1 to i32
    %c0_i32_0 = arith.constant 0 : i32
    %2 = arith.cmpi ne, %1, %c0_i32_0 : i32
    scf.if %2 {
      %cst_28 = arith.constant 0.000000e+00 : f32
      %52 = vector.broadcast %cst_28 : f32 to vector<32x2xf32>
      %c0_29 = arith.constant 0 : index
      %c0_30 = arith.constant 0 : index
      %53 = vector.load %arg9[%c0_29, %c0_30] : memref<32x2xf32, #tpu.memory_space<vmem>>, vector<32x2xf32>
      tpu.vector_store %arg9[%c0_29, %c0_30], %52 {strides = array<i32>} : memref<32x2xf32, #tpu.memory_space<vmem>>, vector<32x2xf32>,
    } else {
    }
    %c0 = arith.constant 0 : index
    %c0_1 = arith.constant 0 : index
    %3 = vector.load %arg3[%c0, %c0_1] : memref<16x128xf32, #tpu.memory_space<vmem>>, vector<16x128xf32>
    %4 = arith.truncf %3 : vector<16x128xf32> to vector<16x128xbf16>
    %c0_2 = arith.constant 0 : index
    %c0_3 = arith.constant 0 : index
    %5 = vector.load %arg4[%c0_2, %c0_3] : memref<32x16xbf16, #tpu.memory_space<vmem>>, vector<32x16xbf16>
    %cst = arith.constant dense<0.000000e+00> : vector<32x128xf32>
    %6 = tpu.matmul %5, %4, %cst {dimension_numbers = #tpu.dot_dimension_numbers<[1], [0], [0], [1], [0, 0, 1, 1], [], []>} : vector<32x16xbf16>, vector<16x128xbf16>, vector<32x128xf32> -> vector<32x128xf32>
    %c0_4 = arith.constant 0 : index
    %c0_5 = arith.constant 0 : index
    %7 = vector.load %arg5[%c0_4, %c0_5] : memref<32x1xf32, #tpu.memory_space<vmem>>, vector<32x1xf32>
    %8 = vector.broadcast %7 : vector<32x1xf32> to vector<32x128xf32>
    %9 = arith.addf %6, %8 : vector<32x128xf32>
    %cst_6 = arith.constant 0.000000e+00 : f32
    %10 = vector.broadcast %cst_6 : f32 to vector<32x128xf32>
    %11 = arith.maximumf %9, %10 : vector<32x128xf32>
    %c0_7 = arith.constant 0 : index
    %c0_8 = arith.constant 0 : index
    %12 = vector.load %arg6[%c0_7, %c0_8] : memref<32x32xbf16, #tpu.memory_space<vmem>>, vector<32x32xbf16>
    %13 = arith.truncf %11 : vector<32x128xf32> to vector<32x128xbf16>
    %cst_9 = arith.constant dense<0.000000e+00> : vector<32x128xf32>
    %14 = tpu.matmul %12, %13, %cst_9 {dimension_numbers = #tpu.dot_dimension_numbers<[1], [0], [0], [1], [0, 0, 1, 1], [], []>} : vector<32x32xbf16>, vector<32x128xbf16>, vector<32x128xf32> -> vector<32x128xf32>
    %c0_10 = arith.constant 0 : index
    %c0_11 = arith.constant 0 : index
    %15 = vector.load %arg7[%c0_10, %c0_11] : memref<32x1xf32, #tpu.memory_space<vmem>>, vector<32x1xf32>
    %16 = vector.broadcast %15 : vector<32x1xf32> to vector<32x128xf32>
    %17 = arith.addf %14, %16 : vector<32x128xf32>
    %cst_12 = arith.constant 0.000000e+00 : f32
    %18 = vector.broadcast %cst_12 : f32 to vector<32x128xf32>
    %19 = arith.maximumf %17, %18 : vector<32x128xf32>
    %c0_13 = arith.constant 0 : index
    %c0_14 = arith.constant 0 : index
    %20 = vector.load %arg2[%c0_13, %c0_14] : memref<1x128xi32, #tpu.memory_space<vmem>>, vector<1x128xi32>
    %c0_i32_15 = arith.constant 0 : i32
    %21 = vector.broadcast %c0_i32_15 : i32 to vector<1x128xi32>
    %22 = arith.cmpi sge, %20, %21 : vector<1x128xi32>
    %cst_16 = arith.constant 0.000000e+00 : f32
    %23 = vector.shape_cast %22 : vector<1x128xi1> to vector<1x128xi1>
    %24 = vector.broadcast %23 : vector<1x128xi1> to vector<32x128xi1>
    %25 = vector.broadcast %cst_16 : f32 to vector<32x128xf32>
    %26 = arith.select %24, %19, %25 : vector<32x128xi1>, vector<32x128xf32>
    %c0_i32_17 = arith.constant 0 : i32
    %27 = vector.broadcast %c0_i32_17 : i32 to vector<1x128xi32>
    %28 = arith.cmpi eq, %20, %27 : vector<1x128xi32>
    %29 = arith.extui %28 : vector<1x128xi1> to vector<1x128xi32>
    %30 = arith.sitofp %29 : vector<1x128xi32> to vector<1x128xf32>
    %c0_18 = arith.constant 0 : index
    %c0_19 = arith.constant 0 : index
    %31 = vector.load %arg9[%c0_18, %c0_19] : memref<32x2xf32, #tpu.memory_space<vmem>>, vector<32x1xf32>
    %32 = vector.broadcast %30 : vector<1x128xf32> to vector<32x128xf32>
    %33 = arith.mulf %26, %32 : vector<32x128xf32>
    %cst_20 = arith.constant dense<0.000000e+00> : vector<32xf32>
    %34 = vector.multi_reduction <add>, %33, %cst_20 [1] : vector<32x128xf32> to vector<32xf32>
    %35 = vector.shape_cast %34 : vector<32xf32> to vector<32x1xf32>
    %36 = arith.addf %31, %35 : vector<32x1xf32>
    %c0_21 = arith.constant 0 : index
    %c0_22 = arith.constant 0 : index
    %37 = vector.load %arg9[%c0_21, %c0_22] : memref<32x2xf32, #tpu.memory_space<vmem>>, vector<32x1xf32>
    tpu.vector_store %arg9[%c0_21, %c0_22], %36 {strides = array<i32>} : memref<32x2xf32, #tpu.memory_space<vmem>>, vector<32x1xf32>,
    %c1_i32 = arith.constant 1 : i32
    %38 = vector.broadcast %c1_i32 : i32 to vector<1x128xi32>
    %39 = arith.cmpi eq, %20, %38 : vector<1x128xi32>
    %40 = arith.extui %39 : vector<1x128xi1> to vector<1x128xi32>
    %41 = arith.sitofp %40 : vector<1x128xi32> to vector<1x128xf32>
    %c0_23 = arith.constant 0 : index
    %c1 = arith.constant 1 : index
    %42 = vector.load %arg9[%c0_23, %c1] : memref<32x2xf32, #tpu.memory_space<vmem>>, vector<32x1xf32>
    %43 = vector.broadcast %41 : vector<1x128xf32> to vector<32x128xf32>
    %44 = arith.mulf %26, %43 : vector<32x128xf32>
    %cst_24 = arith.constant dense<0.000000e+00> : vector<32xf32>
    %45 = vector.multi_reduction <add>, %44, %cst_24 [1] : vector<32x128xf32> to vector<32xf32>
    %46 = vector.shape_cast %45 : vector<32xf32> to vector<32x1xf32>
    %47 = arith.addf %42, %46 : vector<32x1xf32>
    %c0_25 = arith.constant 0 : index
    %c1_26 = arith.constant 1 : index
    %48 = vector.load %arg9[%c0_25, %c1_26] : memref<32x2xf32, #tpu.memory_space<vmem>>, vector<32x1xf32>
    tpu.vector_store %arg9[%c0_25, %c1_26], %47 {strides = array<i32>} : memref<32x2xf32, #tpu.memory_space<vmem>>, vector<32x1xf32>,
    %c2_i32 = arith.constant 2 : i32
    %49 = arith.cmpi eq, %arg1, %c2_i32 : i32
    %50 = arith.extui %49 : i1 to i32
    %c0_i32_27 = arith.constant 0 : i32
    %51 = arith.cmpi ne, %50, %c0_i32_27 : i32
    scf.if %51 {
      %c0_28 = arith.constant 0 : index
      %c0_29 = arith.constant 0 : index
      %52 = vector.load %arg9[%c0_28, %c0_29] : memref<32x2xf32, #tpu.memory_space<vmem>>, vector<32x2xf32>
      %c0_30 = arith.constant 0 : index
      %c0_31 = arith.constant 0 : index
      %c0_32 = arith.constant 0 : index
      %53 = vector.load %arg8[%c0_30, %c0_31, %c0_32] : memref<1x32x2xf32, #tpu.memory_space<vmem>>, vector<1x32x2xf32>
      %54 = vector.shape_cast %53 : vector<1x32x2xf32> to vector<32x2xf32>
      %55 = vector.shape_cast %52 : vector<32x2xf32> to vector<1x32x2xf32>
      tpu.vector_store %arg8[%c0_30, %c0_31, %c0_32], %55 {strides = array<i32>} : memref<1x32x2xf32, #tpu.memory_space<vmem>>, vector<1x32x2xf32>,
    } else {
    }
    return
  }
  func.func @transform_0(%arg0: i32, %arg1: i32) -> (i32, i32) {
    %c3_i32 = arith.constant 3 : i32
    %0 = arith.muli %arg0, %c3_i32 : i32
    %1 = arith.addi %0, %arg1 : i32
    %c0_i32 = arith.constant 0 : i32
    %c0_i32_0 = arith.constant 0 : i32
    return %c0_i32, %1 : i32, i32
  }
  func.func @transform_1(%arg0: i32, %arg1: i32) -> (i32, i32) {
    %c3_i32 = arith.constant 3 : i32
    %0 = arith.muli %arg0, %c3_i32 : i32
    %1 = arith.addi %0, %arg1 : i32
    %c4_i32 = arith.constant 4 : i32
    %2 = arith.minsi %1, %c4_i32 : i32
    %c0_i32 = arith.constant 0 : i32
    %c0_i32_0 = arith.constant 0 : i32
    return %c0_i32, %2 : i32, i32
  }
  func.func @transform_2(%arg0: i32, %arg1: i32) -> (i32, i32) {
    %c0_i32 = arith.constant 0 : i32
    %c0_i32_0 = arith.constant 0 : i32
    %c0_i32_1 = arith.constant 0 : i32
    return %c0_i32, %c0_i32_0 : i32, i32
  }
  func.func @transform_3(%arg0: i32, %arg1: i32) -> (i32, i32) {
    %c0_i32 = arith.constant 0 : i32
    %c0_i32_0 = arith.constant 0 : i32
    %c0_i32_1 = arith.constant 0 : i32
    return %c0_i32, %c0_i32_0 : i32, i32
  }
  func.func @transform_4(%arg0: i32, %arg1: i32) -> (i32, i32) {
    %c0_i32 = arith.constant 0 : i32
    %c0_i32_0 = arith.constant 0 : i32
    %c0_i32_1 = arith.constant 0 : i32
    return %c0_i32, %c0_i32_0 : i32, i32
  }
  func.func @transform_5(%arg0: i32, %arg1: i32) -> (i32, i32) {
    %c0_i32 = arith.constant 0 : i32
    %c0_i32_0 = arith.constant 0 : i32
    %c0_i32_1 = arith.constant 0 : i32
    return %c0_i32, %c0_i32_0 : i32, i32
  }
  func.func @transform_6(%arg0: i32, %arg1: i32) -> (i32, i32, i32) {
    %c0_i32 = arith.constant 0 : i32
    %c0_i32_0 = arith.constant 0 : i32
    %c0_i32_1 = arith.constant 0 : i32
    return %arg0, %c0_i32, %c0_i32_0 : i32, i32, i32
  }
}

</mosaic_0001>

<llo_original>
// kernel: reinforce_forward_batch.1
$region0: #{reinforce_forward_batch.1}
  #allocation0 [shape = 'u32[]', space=smem, size = 0x4, offset = 0x4, fixed_abs, tag = 'smem constant byte address 0x4 - core index']
  #allocation1 [shape = 'u32[72,128]{1,0:T(1,128)}', space=vmem, size = 0x9000, scoped, tag = 'internal scratch']
  #allocation2 [shape = 'f32[32,2]{1,0:T(8,128)}', space=vmem, size = 0x4000, scoped, tag = 'scratch operand']
  %s0 = inlined_call_operand.vmem [shape: s32[1,768], index: 0, kind: input, shape index: {}]
  %s1 = inlined_call_operand.vmem [shape: f32[16,640], index: 1, kind: input, shape index: {}]
  %s2 = inlined_call_operand.vmem [shape: bf16[32,16], index: 2, kind: input, shape index: {}]
  %s3 = inlined_call_operand.vmem [shape: f32[32,1], index: 3, kind: input, shape index: {}]
  %s4 = inlined_call_operand.vmem [shape: bf16[32,32], index: 4, kind: input, shape index: {}]
  %s5 = inlined_call_operand.vmem [shape: f32[32,1], index: 5, kind: input, shape index: {}]
  %s6 = inlined_call_operand.vmem [shape: f32[2,32,2], index: 6, kind: output, shape index: {}]
  %s7 = sld [smem:[#allocation0]]
  $region103: #{reinforce_forward_batch.1} parent=0
    _
  %s9 = ssub.s32 1, %s7
  %s10 = scalar_select 0, %s9, %s7
  $region1: #{reinforce_forward_batch.1} parent=0
    #allocation3 [shape = 'u8[16384]{0}', space=vmem, size = 0x4000, scoped, tag = 'input window, operand 1']
    loop: start=0, step=1, limit=8
    $region2: #{reinforce_forward_batch.1} parent=1 // loop_pre_header
      _
    $region3: #{reinforce_forward_batch.1} parent=1 // loop_header
      %s12 = sphi 0, %s16
      %p13 = scmp.ge.s32.totalorder %s12, 8
      %s19 = sphi 0, %s31
      %s20 = sphi 0, %s27
      %s21 = sphi 0, %s19
      %s22 = sphi 0, %s20
      %s23 = sphi 0, %s21
      %s24 = sphi 0, %s22
      %s38 = sphi 0, %s40
      %s41 = sphi 0, %s38
      %s42 = sphi 0, %s41
      %s58 = sphi 0, %s42
      %s72 = sphi 0, %s74
      %s75 = sphi 0, %s72
      %s76 = sphi 0, %s75
      %s92 = sphi 0, %s76
      %s96 = sphi 0, %s96
      %s98 = sphi 0, %s96
      %s99 = sphi 0, %s98
      %s113 = sphi 0, %s99
      %s117 = sphi 0, %s117
      %s119 = sphi 0, %s117
      %s120 = sphi 0, %s119
      %s134 = sphi 0, %s120
      %s138 = sphi 0, %s138
      %s140 = sphi 0, %s138
      %s141 = sphi 0, %s140
      %s155 = sphi 0, %s141
      %s159 = sphi 0, %s159
      %s161 = sphi 0, %s159
      %s162 = sphi 0, %s161
      %s176 = sphi 0, %s162
      %s182 = sphi 0, %s184
      %s185 = sphi 0, %s182
      %s186 = sphi 0, %s185
      %s202 = sphi 0, %s186
    $region4: #{reinforce_forward_batch.1} parent=1 // loop_header_branch
      %15 = sbr.rel (%p13) target = $region8
    $region5: #{reinforce_forward_batch.1} parent=1 // loop_body
      %s17 = ssub.s32 %s12, 1
      %s18 = ssub.s32 %s12, 2
      %s25 = sadd.s32 1, %s20
      %p26 = scmp.ge.s32.totalorder %s25, 3
      %s27 = scalar_select %p26, 0, %s25
      %s28 = sadd.s32 1, %s19
      %s29 = scalar_select %p26, %s28, %s19
      %p30 = scmp.ge.s32.totalorder %s29, 2
      %s31 = scalar_select %p30, 0, %s29
      %s32 = smul.u32 %s19, 3
      %s33 = sadd.s32 %s32, %s20
      %s34 = smul.u32 %s31, 3
      %s35 = sadd.s32 %s34, %s27
      %s36 = ssub.s32 %s33, %s35
      %p37 = scmp.eq.s32.totalorder %s36, 0
      %s39 = sadd.s32 %s38, 1
      %s40 = scalar_select %p37, %s38, %s39
      %p43 = pneg %p37
      %p44 = scmp.eq.s32.totalorder %s12, 5
      %p45 = por %p43, %p44
      %p46 = scmp.ne.s32.totalorder %s38, %s41
      %p47 = scmp.eq.s32.totalorder %s12, 0
      %p48 = por %p46, %p47
      %p49 = scmp.ne.s32.totalorder %s38, %s41
      %p50 = scmp.eq.s32.totalorder %s17, 5
      %p51 = por %p49, %p50
      %p52 = scmp.ne.s32.totalorder %s41, %s42
      %p53 = scmp.eq.s32.totalorder %s17, 0
      %p54 = por %p52, %p53
      %p55 = scmp.ne.s32.totalorder %s41, %s42
      %p56 = scmp.eq.s32.totalorder %s18, 5
      %p57 = por %p55, %p56
      %p59 = scmp.ne.s32.totalorder %s42, %s58
      %p60 = scmp.eq.s32.totalorder %s18, 0
      %p61 = por %p59, %p60
      %s62 = smul.u32 %s19, 3
      %s63 = sadd.s32 %s62, %s20
      %p64 = scmp.lt.s32.totalorder %s63, 4
      %s65 = scalar_select %p64, %s63, 4
      %s66 = smul.u32 %s31, 3
      %s67 = sadd.s32 %s66, %s27
      %p68 = scmp.lt.s32.totalorder %s67, 4
      %s69 = scalar_select %p68, %s67, 4
      %s70 = ssub.s32 %s65, %s69
      %p71 = scmp.eq.s32.totalorder %s70, 0
      %s73 = sadd.s32 %s72, 1
      %s74 = scalar_select %p71, %s72, %s73
      %p77 = pneg %p71
      %p78 = scmp.eq.s32.totalorder %s12, 5
      %p79 = por %p77, %p78
      %p80 = scmp.ne.s32.totalorder %s72, %s75
      %p81 = scmp.eq.s32.totalorder %s12, 0
      %p82 = por %p80, %p81
      %p83 = scmp.ne.s32.totalorder %s72, %s75
      %p84 = scmp.eq.s32.totalorder %s17, 5
      %p85 = por %p83, %p84
      %p86 = scmp.ne.s32.totalorder %s75, %s76
      %p87 = scmp.eq.s32.totalorder %s17, 0
      %p88 = por %p86, %p87
      %p89 = scmp.ne.s32.totalorder %s75, %s76
      %p90 = scmp.eq.s32.totalorder %s18, 5
      %p91 = por %p89, %p90
      %p93 = scmp.ne.s32.totalorder %s76, %s92
      %p94 = scmp.eq.s32.totalorder %s18, 0
      %p95 = por %p93, %p94
      %s97 = sadd.s32 %s96, 1
      %p100 = scmp.eq.s32.totalorder %s12, 5
      %p101 = scmp.ne.s32.totalorder %s96, %s98
      %p102 = scmp.eq.s32.totalorder %s12, 0
      %p103 = por %p101, %p102
      %p104 = scmp.ne.s32.totalorder %s96, %s98
      %p105 = scmp.eq.s32.totalorder %s17, 5
      %p106 = por %p104, %p105
      %p107 = scmp.ne.s32.totalorder %s98, %s99
      %p108 = scmp.eq.s32.totalorder %s17, 0
      %p109 = por %p107, %p108
      %p110 = scmp.ne.s32.totalorder %s98, %s99
      %p111 = scmp.eq.s32.totalorder %s18, 5
      %p112 = por %p110, %p111
      %p114 = scmp.ne.s32.totalorder %s99, %s113
      %p115 = scmp.eq.s32.totalorder %s18, 0
      %p116 = por %p114, %p115
      %s118 = sadd.s32 %s117, 1
      %p121 = scmp.eq.s32.totalorder %s12, 5
      %p122 = scmp.ne.s32.totalorder %s117, %s119
      %p123 = scmp.eq.s32.totalorder %s12, 0
      %p124 = por %p122, %p123
      %p125 = scmp.ne.s32.totalorder %s117, %s119
      %p126 = scmp.eq.s32.totalorder %s17, 5
      %p127 = por %p125, %p126
      %p128 = scmp.ne.s32.totalorder %s119, %s120
      %p129 = scmp.eq.s32.totalorder %s17, 0
      %p130 = por %p128, %p129
      %p131 = scmp.ne.s32.totalorder %s119, %s120
      %p132 = scmp.eq.s32.totalorder %s18, 5
      %p133 = por %p131, %p132
      %p135 = scmp.ne.s32.totalorder %s120, %s134
      %p136 = scmp.eq.s32.totalorder %s18, 0
      %p137 = por %p135, %p136
      %s139 = sadd.s32 %s138, 1
      %p142 = scmp.eq.s32.totalorder %s12, 5
      %p143 = scmp.ne.s32.totalorder %s138, %s140
      %p144 = scmp.eq.s32.totalorder %s12, 0
      %p145 = por %p143, %p144
      %p146 = scmp.ne.s32.totalorder %s138, %s140
      %p147 = scmp.eq.s32.totalorder %s17, 5
      %p148 = por %p146, %p147
      %p149 = scmp.ne.s32.totalorder %s140, %s141
      %p150 = scmp.eq.s32.totalorder %s17, 0
      %p151 = por %p149, %p150
      %p152 = scmp.ne.s32.totalorder %s140, %s141
      %p153 = scmp.eq.s32.totalorder %s18, 5
      %p154 = por %p152, %p153
      %p156 = scmp.ne.s32.totalorder %s141, %s155
      %p157 = scmp.eq.s32.totalorder %s18, 0
      %p158 = por %p156, %p157
      %s160 = sadd.s32 %s159, 1
      %p163 = scmp.eq.s32.totalorder %s12, 5
      %p164 = scmp.ne.s32.totalorder %s159, %s161
      %p165 = scmp.eq.s32.totalorder %s12, 0
      %p166 = por %p164, %p165
      %p167 = scmp.ne.s32.totalorder %s159, %s161
      %p168 = scmp.eq.s32.totalorder %s17, 5
      %p169 = por %p167, %p168
      %p170 = scmp.ne.s32.totalorder %s161, %s162
      %p171 = scmp.eq.s32.totalorder %s17, 0
      %p172 = por %p170, %p171
      %p173 = scmp.ne.s32.totalorder %s161, %s162
      %p174 = scmp.eq.s32.totalorder %s18, 5
      %p175 = por %p173, %p174
      %p177 = scmp.ne.s32.totalorder %s162, %s176
      %p178 = scmp.eq.s32.totalorder %s18, 0
      %p179 = por %p177, %p178
      %s180 = ssub.s32 %s19, %s31
      %p181 = scmp.eq.s32.totalorder %s180, 0
      %s183 = sadd.s32 %s182, 1
      %s184 = scalar_select %p181, %s182, %s183
      %p187 = pneg %p181
      %p188 = scmp.eq.s32.totalorder %s12, 5
      %p189 = por %p187, %p188
      %p190 = scmp.ne.s32.totalorder %s182, %s185
      %p191 = scmp.eq.s32.totalorder %s12, 0
      %p192 = por %p190, %p191
      %p193 = scmp.ne.s32.totalorder %s182, %s185
      %p194 = scmp.eq.s32.totalorder %s17, 5
      %p195 = por %p193, %p194
      %p196 = scmp.ne.s32.totalorder %s185, %s186
      %p197 = scmp.eq.s32.totalorder %s17, 0
      %p198 = por %p196, %p197
      %p199 = scmp.ne.s32.totalorder %s185, %s186
      %p200 = scmp.eq.s32.totalorder %s18, 5
      %p201 = por %p199, %p200
      %p203 = scmp.ne.s32.totalorder %s186, %s202
      %p204 = scmp.eq.s32.totalorder %s18, 0
      %p205 = por %p203, %p204
      %p206 = scmp.le.s32.totalorder 1, %s12
      %p207 = scmp.lt.s32.totalorder %s12, 7
      %p208 = pnand %p206, %p207
      %p209 = pneg %p208
      // Predicated region
      $region9: #{reinforce_forward_batch.1} parent=5 // pred_check
        _
      $region10: #{reinforce_forward_batch.1} parent=5 // pred_check_branch
        %211 = sbr.rel (%p208) target = $region12
      $region11: #{reinforce_forward_batch.1} parent=5 // pred_region
        %s212 = ssub.s32 %s12, 1
        // Predicated region
        $region13: #{reinforce_forward_batch.1} parent=11 // pred_check
          %p213 = pneg %p109
        $region14: #{reinforce_forward_batch.1} parent=11 // pred_check_branch
          %215 = sbr.rel (%p213) target = $region16
        $region15: #{reinforce_forward_batch.1} parent=11 // pred_region
          _
        $region16: #{reinforce_forward_batch.1} parent=11 // pred_fallthru
          _
        // Predicated region
        $region17: #{reinforce_forward_batch.1} parent=11 // pred_check
          %p216 = pneg %p130
        $region18: #{reinforce_forward_batch.1} parent=11 // pred_check_branch
          %218 = sbr.rel (%p216) target = $region20
        $region19: #{reinforce_forward_batch.1} parent=11 // pred_region
          _
        $region20: #{reinforce_forward_batch.1} parent=11 // pred_fallthru
          _
        // Predicated region
        $region21: #{reinforce_forward_batch.1} parent=11 // pred_check
          %p219 = pneg %p151
        $region22: #{reinforce_forward_batch.1} parent=11 // pred_check_branch
          %221 = sbr.rel (%p219) target = $region24
        $region23: #{reinforce_forward_batch.1} parent=11 // pred_region
          _
        $region24: #{reinforce_forward_batch.1} parent=11 // pred_fallthru
          _
        // Predicated region
        $region25: #{reinforce_forward_batch.1} parent=11 // pred_check
          %p222 = pneg %p172
        $region26: #{reinforce_forward_batch.1} parent=11 // pred_check_branch
          %224 = sbr.rel (%p222) target = $region28
        $region27: #{reinforce_forward_batch.1} parent=11 // pred_region
          _
        $region28: #{reinforce_forward_batch.1} parent=11 // pred_fallthru
          _
      $region12: #{reinforce_forward_batch.1} parent=5 // pred_fallthru
        _
      %p225 = scmp.lt.s32.totalorder %s12, 6
      // Predicated region
      $region29: #{reinforce_forward_batch.1} parent=5 // pred_check
        %p226 = pneg %p225
      $region30: #{reinforce_forward_batch.1} parent=5 // pred_check_branch
        %228 = sbr.rel (%p226) target = $region32
      $region31: #{reinforce_forward_batch.1} parent=5 // pred_region
        // Predicated region
        $region33: #{reinforce_forward_batch.1} parent=31 // pred_check
          %p229 = pneg %p48
        $region34: #{reinforce_forward_batch.1} parent=31 // pred_check_branch
          %231 = sbr.rel (%p229) target = $region36
        $region35: #{reinforce_forward_batch.1} parent=31 // pred_region
          %s232 = smul.u32 %s19, 3
          %s233 = sadd.s32 %s232, %s20
          %p234 = scmp.lt.s32.totalorder %s233, 5
          %s235 = scalar_select %p234, %s233, 5
          %s236 = scalar_lea.vmem %s0, %s235
          %s237 = smul.u32 %s19, 3
          %s238 = sadd.s32 %s237, %s20
        $region36: #{reinforce_forward_batch.1} parent=31 // pred_fallthru
          _
        // Predicated region
        $region37: #{reinforce_forward_batch.1} parent=31 // pred_check
          %p239 = pneg %p82
        $region38: #{reinforce_forward_batch.1} parent=31 // pred_check_branch
          %241 = sbr.rel (%p239) target = $region40
        $region39: #{reinforce_forward_batch.1} parent=31 // pred_region
          %s242 = sand.u32 %s72, 1
          %s243 = sand.u32 %s72, 1
          %s244 = smul.addr %s243, 16
          %s245 = scalar_lea.vmem [#allocation3], %s244
          %s246 = smul.u32 %s19, 3
          %s247 = sadd.s32 %s246, %s20
          %p248 = scmp.lt.s32.totalorder %s247, 4
          %s249 = scalar_select %p248, %s247, 4
          %s250 = smul.addr %s249, 8
          %s251 = scalar_lea.vmem %s1, %s250
          // Predicated region
          $region41: #{reinforce_forward_batch.1} parent=39 // pred_check
            _
          $region42: #{reinforce_forward_batch.1} parent=39 // pred_check_branch
            %253 = sbr.rel (0) target = $region44
          $region43: #{reinforce_forward_batch.1} parent=39 // pred_region
            // Predicated region
            $region45: #{reinforce_forward_batch.1} parent=43 // pred_check
              _
            $region46: #{reinforce_forward_batch.1} parent=43 // pred_check_branch
              %255 = sbr.rel (0) target = $region48
            $region47: #{reinforce_forward_batch.1} parent=43 // pred_region
              // Predicated region
              $region60: #{reinforce_forward_batch.1} parent=47 // pred_check
                _
              $region61: #{reinforce_forward_batch.1} parent=47 // pred_check_branch
                %273 = sbr.rel (0) target = $region63
              $region62: #{reinforce_forward_batch.1} parent=47 // pred_region
                loop: start=0, step=1, limit=1
                $region64: #{reinforce_forward_batch.1} parent=62 // loop_pre_header
                  _
                $region65: #{reinforce_forward_batch.1} parent=62 // loop_header
                  %s275 = sphi 0, %s279
                  %p276 = scmp.ge.s32.totalorder %s275, 1
                  %s280 = sphi %s251, %s251
                  %s281 = sphi %s245, %s245
                $region66: #{reinforce_forward_batch.1} parent=62 // loop_header_branch
                  %278 = sbr.rel (%p276) target = $region70
                $region67: #{reinforce_forward_batch.1} parent=62 // loop_body
                  %v282 = vld [vmem:[%s280] sm:$0xff]
                  %283 = vst [vmem:[%s281] sm:$0xff] %v282
                  %v284 = vld [vmem:[%s280 + $0x28] sm:$0xff]
                  %285 = vst [vmem:[%s281 + $0x8] sm:$0xff] %v284
                $region68: #{reinforce_forward_batch.1} parent=62 // loop_footer
                  %s279 = sadd.s32 1, %s275
                $region69: #{reinforce_forward_batch.1} parent=62 // loop_footer_branch
                  %274 = sbr.rel target = $region65
                $region70: #{reinforce_forward_batch.1} parent=62 // loop_exit
                  _
              $region63: #{reinforce_forward_batch.1} parent=47 // pred_fallthru
                _
              // Predicated region
              $region71: #{reinforce_forward_batch.1} parent=47 // pred_check
                _
              $region72: #{reinforce_forward_batch.1} parent=47 // pred_check_branch
                %287 = sbr.rel target = $region74
              $region73: #{reinforce_forward_batch.1} parent=47 // pred_region
                _
              $region74: #{reinforce_forward_batch.1} parent=47 // pred_fallthru
                _
            $region48: #{reinforce_forward_batch.1} parent=43 // pred_fallthru
              _
            // Predicated region
            $region49: #{reinforce_forward_batch.1} parent=43 // pred_check
              _
            $region50: #{reinforce_forward_batch.1} parent=43 // pred_check_branch
              %257 = sbr.rel target = $region52
            $region51: #{reinforce_forward_batch.1} parent=43 // pred_region
              %s259 = ssub.s32 256, 1
              loop: start=0, step=1, limit=1
              $region53: #{reinforce_forward_batch.1} parent=51 // loop_pre_header
                _
              $region54: #{reinforce_forward_batch.1} parent=51 // loop_header
                %s261 = sphi 0, %s265
                %p262 = scmp.ge.s32.totalorder %s261, 1
                %s266 = sphi %s251, %s251
                %s267 = sphi %s245, %s245
              $region55: #{reinforce_forward_batch.1} parent=51 // loop_header_branch
                %264 = sbr.rel (%p262) target = $region59
              $region56: #{reinforce_forward_batch.1} parent=51 // loop_body
                %v268 = vld [vmem:[%s266] sm:%s259]
                %269 = vst [vmem:[%s267] sm:%s259] %v268
                %v270 = vld [vmem:[%s266 + $0x28] sm:%s259]
                %271 = vst [vmem:[%s267 + $0x8] sm:%s259] %v270
              $region57: #{reinforce_forward_batch.1} parent=51 // loop_footer
                %s265 = sadd.s32 1, %s261
              $region58: #{reinforce_forward_batch.1} parent=51 // loop_footer_branch
                %260 = sbr.rel target = $region54
              $region59: #{reinforce_forward_batch.1} parent=51 // loop_exit
                _
            $region52: #{reinforce_forward_batch.1} parent=43 // pred_fallthru
              _
          $region44: #{reinforce_forward_batch.1} parent=39 // pred_fallthru
            _
          %288 = vnop
        $region40: #{reinforce_forward_batch.1} parent=31 // pred_fallthru
          _
      $region32: #{reinforce_forward_batch.1} parent=5 // pred_fallthru
        _
      %p289 = scmp.le.s32.totalorder 1, %s12
      %p290 = scmp.lt.s32.totalorder %s12, 7
      %p291 = pnand %p289, %p290
      %p292 = pneg %p291
      // Predicated region
      $region75: #{reinforce_forward_batch.1} parent=5 // pred_check
        _
      $region76: #{reinforce_forward_batch.1} parent=5 // pred_check_branch
        %294 = sbr.rel (%p291) target = $region78
      $region77: #{reinforce_forward_batch.1} parent=5 // pred_region
        %s295 = ssub.s32 %s12, 1
        %s296 = sand.u32 %s75, 1
        %s297 = sand.u32 %s75, 1
        %s298 = smul.addr %s297, 16
        %s299 = scalar_lea.vmem [#allocation3], %s298
        // Predicated region
        $region79: #{reinforce_forward_batch.1} parent=77 // pred_check
          %p300 = pneg %p88
        $region80: #{reinforce_forward_batch.1} parent=77 // pred_check_branch
          %302 = sbr.rel (%p300) target = $region82
        $region81: #{reinforce_forward_batch.1} parent=77 // pred_region
          _
        $region82: #{reinforce_forward_batch.1} parent=77 // pred_fallthru
          _
        %s303 = smul.u32 %s21, 3
        %s304 = sadd.s32 %s303, %s22
        %p305 = scmp.lt.s32.totalorder %s304, 5
        %s306 = scalar_select %p305, %s304, 5
        %s307 = scalar_lea.vmem %s0, %s306
        %p308 = pneg %p54
        %p309 = pneg %p51
        %s310 = sand.u32 %s75, 1
        %s311 = sand.u32 %s75, 1
        %s312 = smul.addr %s311, 16
        %s313 = scalar_lea.vmem [#allocation3], %s312
        %p314 = pneg %p88
        %p315 = pneg %p85
        %p316 = pneg %p109
        %p317 = pneg %p106
        %p318 = pneg %p130
        %p319 = pneg %p127
        %p320 = pneg %p151
        %p321 = pneg %p148
        %p322 = pneg %p172
        %p323 = pneg %p169
        %p324 = pneg %p198
        %p325 = pneg %p195
        %p326 = scmp.lt.s32.totalorder %s21, 1
        %s327 = scalar_select %p326, %s21, 1
        %s328 = smul.addr %s327, 4
        %s329 = smul.addr %s328, 8
        %s330 = scalar_lea.vmem %s6, %s329
        %s331 = smul.u32 %s21, 3
        %s332 = sadd.s32 %s331, %s22
        %p333 = scmp.lt.s32.totalorder %s332, 5
        %s334 = scalar_select %p333, %s332, 5
        %s335 = scalar_lea.vmem %s0, %s334
        %s336 = smul.u32 %s21, 3
        %s337 = sadd.s32 %s336, %s22
        %s338 = smul.u32 %s21, 3
        %s339 = sadd.s32 %s338, %s22
        %p340 = scmp.lt.s32.totalorder %s339, 4
        %s341 = scalar_select %p340, %s339, 4
        %p342 = scmp.lt.s32.totalorder %s21, 1
        %s343 = scalar_select %p342, %s21, 1
        %s344 = smul.addr %s343, 4
        %s345 = smul.addr %s344, 8
        %s346 = scalar_lea.vmem %s6, %s345
        %p348 = scmp.eq.s32.totalorder %s22, 0
        // Predicated region
        $region83: #{reinforce_forward_batch.1} parent=77 // pred_check
          %p349 = pneg %p348
        $region84: #{reinforce_forward_batch.1} parent=77 // pred_check_branch
          %351 = sbr.rel (%p349) target = $region86
        $region85: #{reinforce_forward_batch.1} parent=77 // pred_region
          %vm352 = vcmask 15360
          %353 = vst.msk [vmem:[#allocation2] sm:$0xff] %vm352, 0.0
          %354 = vst.msk [vmem:[#allocation2 + $0x8] sm:$0xff] %vm352, 0.0
          %355 = vst.msk [vmem:[#allocation2 + $0x10] sm:$0xff] %vm352, 0.0
          %356 = vst.msk [vmem:[#allocation2 + $0x18] sm:$0xff] %vm352, 0.0
        $region86: #{reinforce_forward_batch.1} parent=77 // pred_fallthru
          _
        %v357 = vld [vmem:[%s299] sm:$0xff]
        %v358 = vld [vmem:[%s299 + $0x8] sm:$0xff]
        %v359 = vpack.c.bf16 %v358, %v357
        %v360 = vld [vmem:[%s2] sm:$0xf]
        %v361 = vld [vmem:[%s2 + $0x4] sm:$0xf]
        %v362 = vld [vmem:[%s2 + $0x8] sm:$0xf]
        %v363 = vld [vmem:[%s2 + $0xc] sm:$0xf]
        %v364 = vld [vmem:[%s3] sm:$0xff]
        %v365 = vld [vmem:[%s3 + $0x8] sm:$0xff]
        %v366 = vld [vmem:[%s3 + $0x10] sm:$0xff]
        %v367 = vld [vmem:[%s3 + $0x18] sm:$0xff]
        %369 = vset.pattern.permute.xlu0 0
        %370 = vperm.xlu0 %369, %v364
        %v371 = vpop.permute.xlu0 %370
        %374 = vset.pattern.permute.xlu0 0
        %375 = vperm.xlu0 %374, %v365
        %v376 = vpop.permute.xlu0 %375
        %379 = vset.pattern.permute.xlu0 0
        %380 = vperm.xlu0 %379, %v366
        %v381 = vpop.permute.xlu0 %380
        %384 = vset.pattern.permute.xlu0 0
        %385 = vperm.xlu0 %384, %v367
        %v386 = vpop.permute.xlu0 %385
        %v392 = vunpack.c.l.b16 %v360
        %v393 = vunpack.c.l.b16 %v361
        %v394 = vunpack.c.l.b16 %v362
        %v395 = vunpack.c.l.b16 %v363
        %v396 = vpack.c.b16 %v393, %v392
        %v397 = vpack.c.b16 %v395, %v394
        %vm398 = vcmask 130048
        %v400 = vsel %vm398, %v396, 0
        %v403 = vsel %vm398, %v397, 0
        %405 = vmatpush.bf16.msra.mxu0 0
        %406 = vmatpush.bf16.msra.mxu0 0
        %407 = vmatpush.bf16.msra.mxu0 0
        %408 = vmatpush.bf16.msra.mxu0 0
        %409 = vmatpush.bf16.msra.mxu0 0
        %410 = vmatpush.bf16.msra.mxu0 0
        %411 = vmatpush.bf16.msra.mxu0 0
        %412 = vmatpush.bf16.msra.mxu0 %v359
        %413 = vmatmul.bf16.gmra.mxu0 %v400
        %v414 = vpop.f32.mrf.mxu0
        %v415 = vadd.f32 %v371, %v414
        %v416 = vpop.f32.mrf.mxu0
        %v417 = vadd.f32 %v376, %v416
        %418 = vmatmul.bf16.gmra.mxu0 %v403
        %v419 = vpop.f32.mrf.mxu0
        %v420 = vadd.f32 %v381, %v419
        %v421 = vpop.f32.mrf.mxu0
        %v422 = vadd.f32 %v386, %v421
        %423 = vdwg.mxu0
        %v424 = vmax.f32 %v415, 0.0
        %v425 = vmax.f32 %v417, 0.0
        %v426 = vmax.f32 %v420, 0.0
        %v427 = vmax.f32 %v422, 0.0
        %v428 = vld [vmem:[%s4] sm:$0xf]
        %v429 = vld [vmem:[%s4 + $0x4] sm:$0xf]
        %v430 = vld [vmem:[%s4 + $0x8] sm:$0xf]
        %v431 = vld [vmem:[%s4 + $0xc] sm:$0xf]
        %v432 = vpack.c.bf16 %v425, %v424
        %v433 = vpack.c.bf16 %v427, %v426
        %v434 = vld [vmem:[%s5] sm:$0xff]
        %v435 = vld [vmem:[%s5 + $0x8] sm:$0xff]
        %v436 = vld [vmem:[%s5 + $0x10] sm:$0xff]
        %v437 = vld [vmem:[%s5 + $0x18] sm:$0xff]
        %439 = vset.pattern.permute.xlu0 0
        %440 = vperm.xlu0 %439, %v434
        %v441 = vpop.permute.xlu0 %440
        %444 = vset.pattern.permute.xlu0 0
        %445 = vperm.xlu0 %444, %v435
        %v446 = vpop.permute.xlu0 %445
        %449 = vset.pattern.permute.xlu0 0
        %450 = vperm.xlu0 %449, %v436
        %v451 = vpop.permute.xlu0 %450
        %454 = vset.pattern.permute.xlu0 0
        %455 = vperm.xlu0 %454, %v437
        %v456 = vpop.permute.xlu0 %455
        %v462 = vunpack.c.l.b16 %v428
        %v463 = vunpack.c.l.b16 %v429
        %v464 = vunpack.c.l.b16 %v430
        %v465 = vunpack.c.l.b16 %v431
        %v466 = vpack.c.b16 %v463, %v462
        %v467 = vpack.c.b16 %v465, %v464
        %vm468 = vcmask 261120
        %v470 = vsel %vm468, %v466, 0
        %v473 = vsel %vm468, %v467, 0
        %475 = vmatpush.bf16.msra.mxu0 0
        %476 = vmatpush.bf16.msra.mxu0 0
        %477 = vmatpush.bf16.msra.mxu0 0
        %478 = vmatpush.bf16.msra.mxu0 0
        %479 = vmatpush.bf16.msra.mxu0 0
        %480 = vmatpush.bf16.msra.mxu0 0
        %481 = vmatpush.bf16.msra.mxu0 %v433
        %482 = vmatpush.bf16.msra.mxu0 %v432
        %483 = vmatmul.bf16.gmra.mxu0 %v470
        %v484 = vpop.f32.mrf.mxu0
        %v485 = vadd.f32 %v441, %v484
        %v486 = vpop.f32.mrf.mxu0
        %v487 = vadd.f32 %v446, %v486
        %488 = vmatmul.bf16.gmra.mxu0 %v473
        %v489 = vpop.f32.mrf.mxu0
        %v490 = vadd.f32 %v451, %v489
        %v491 = vpop.f32.mrf.mxu0
        %v492 = vadd.f32 %v456, %v491
        %493 = vdwg.mxu0
        %v494 = vmax.f32 %v485, 0.0
        %v495 = vmax.f32 %v487, 0.0
        %v496 = vmax.f32 %v490, 0.0
        %v497 = vmax.f32 %v492, 0.0
        %v498 = vld [vmem:[%s335] sm:$0x1]
        %vm499 = vcmp.ge.s32.totalorder %v498, 0
        %v500 = vsel %vm499, 1, 0
        %v501 = vperm.slane %v500, 0
        %vm502 = vcmp.eq.s32.totalorder %v501, 1
        %v503 = vsel %vm502, %v494, 0.0
        %v504 = vsel %vm502, %v495, 0.0
        %v505 = vsel %vm502, %v496, 0.0
        %v506 = vsel %vm502, %v497, 0.0
        %vm507 = vcmp.eq.s32.totalorder %v498, 0
        %v508 = vsel %vm507, 1, 0
        %v509 = vcvt.s32.f32 %v508
        %v510 = vld [vmem:[#allocation2] sm:$0xff]
        %v511 = vld [vmem:[#allocation2 + $0x8] sm:$0xff]
        %v512 = vld [vmem:[#allocation2 + $0x10] sm:$0xff]
        %v513 = vld [vmem:[#allocation2 + $0x18] sm:$0xff]
        %v515 = vperm.slane %v509, 0
        %v517 = vmul.f32 %v503, %v515
        %v518 = vmul.f32 %v504, %v515
        %v519 = vmul.f32 %v505, %v515
        %v520 = vmul.f32 %v506, %v515
        %521 = vadd.xlane.f32.xlu0 %v517
        %v522 = vpop.xlane.xlu0 %521
        %523 = vadd.xlane.f32.xlu0 %v518
        %v524 = vpop.xlane.xlu0 %523
        %525 = vadd.xlane.f32.xlu0 %v519
        %v526 = vpop.xlane.xlu0 %525
        %527 = vadd.xlane.f32.xlu0 %v520
        %v528 = vpop.xlane.xlu0 %527
        %v529 = vadd.f32 %v510, %v522
        %v530 = vadd.f32 %v511, %v524
        %v531 = vadd.f32 %v512, %v526
        %v532 = vadd.f32 %v513, %v528
        %vm533 = vcmask 7168
        %534 = vst.msk [vmem:[#allocation2] sm:$0xff] %vm533, %v529
        %535 = vst.msk [vmem:[#allocation2 + $0x8] sm:$0xff] %vm533, %v530
        %536 = vst.msk [vmem:[#allocation2 + $0x10] sm:$0xff] %vm533, %v531
        %537 = vst.msk [vmem:[#allocation2 + $0x18] sm:$0xff] %vm533, %v532
        %vm538 = vcmp.eq.s32.totalorder %v498, 1
        %v539 = vsel %vm538, 1, 0
        %v540 = vcvt.s32.f32 %v539
        %v541 = vld [vmem:[#allocation2] sm:$0xff]
        %v542 = vld [vmem:[#allocation2 + $0x8] sm:$0xff]
        %v543 = vld [vmem:[#allocation2 + $0x10] sm:$0xff]
        %v544 = vld [vmem:[#allocation2 + $0x18] sm:$0xff]
        %v546 = vperm.slane %v540, 0
        %v548 = vmul.f32 %v503, %v546
        %v549 = vmul.f32 %v504, %v546
        %v550 = vmul.f32 %v505, %v546
        %v551 = vmul.f32 %v506, %v546
        %552 = vadd.xlane.f32.xlu0 %v548
        %v553 = vpop.xlane.xlu0 %552
        %554 = vadd.xlane.f32.xlu0 %v549
        %v555 = vpop.xlane.xlu0 %554
        %556 = vadd.xlane.f32.xlu0 %v550
        %v557 = vpop.xlane.xlu0 %556
        %558 = vadd.xlane.f32.xlu0 %v551
        %v559 = vpop.xlane.xlu0 %558
        %v560 = vadd.f32 %v541, %v553
        %v561 = vadd.f32 %v542, %v555
        %v562 = vadd.f32 %v543, %v557
        %v563 = vadd.f32 %v544, %v559
        %vm564 = vcmask 15368
        %565 = vst.msk [vmem:[#allocation2] sm:$0xff] %vm564, %v560
        %566 = vst.msk [vmem:[#allocation2 + $0x8] sm:$0xff] %vm564, %v561
        %567 = vst.msk [vmem:[#allocation2 + $0x10] sm:$0xff] %vm564, %v562
        %568 = vst.msk [vmem:[#allocation2 + $0x18] sm:$0xff] %vm564, %v563
        %p569 = scmp.eq.s32.totalorder %s22, 2
        // Predicated region
        $region87: #{reinforce_forward_batch.1} parent=77 // pred_check
          %p570 = pneg %p569
        $region88: #{reinforce_forward_batch.1} parent=77 // pred_check_branch
          %572 = sbr.rel (%p570) target = $region90
        $region89: #{reinforce_forward_batch.1} parent=77 // pred_region
          %v573 = vld [vmem:[#allocation2] sm:$0xff]
          %v574 = vld [vmem:[#allocation2 + $0x8] sm:$0xff]
          %v575 = vld [vmem:[#allocation2 + $0x10] sm:$0xff]
          %v576 = vld [vmem:[#allocation2 + $0x18] sm:$0xff]
          %vm577 = vcmask 15360
          %578 = vst.msk [vmem:[%s346] sm:$0xff] %vm577, %v573
          %579 = vst.msk [vmem:[%s346 + $0x8] sm:$0xff] %vm577, %v574
          %580 = vst.msk [vmem:[%s346 + $0x10] sm:$0xff] %vm577, %v575
          %581 = vst.msk [vmem:[%s346 + $0x18] sm:$0xff] %vm577, %v576
        $region90: #{reinforce_forward_batch.1} parent=77 // pred_fallthru
          _
        %p582 = scmp.lt.s32.totalorder %s21, 1
        %s583 = scalar_select %p582, %s21, 1
        %s584 = smul.addr %s583, 4
        %s585 = smul.addr %s584, 8
        %s586 = scalar_lea.vmem %s6, %s585
        // Predicated region
        $region91: #{reinforce_forward_batch.1} parent=77 // pred_check
          %p587 = pneg %p195
        $region92: #{reinforce_forward_batch.1} parent=77 // pred_check_branch
          %589 = sbr.rel (%p587) target = $region94
        $region93: #{reinforce_forward_batch.1} parent=77 // pred_region
          _
        $region94: #{reinforce_forward_batch.1} parent=77 // pred_fallthru
          _
      $region78: #{reinforce_forward_batch.1} parent=5 // pred_fallthru
        _
      %p590 = scmp.le.s32.totalorder 2, %s12
      // Predicated region
      $region95: #{reinforce_forward_batch.1} parent=5 // pred_check
        %p591 = pneg %p590
      $region96: #{reinforce_forward_batch.1} parent=5 // pred_check_branch
        %593 = sbr.rel (%p591) target = $region98
      $region97: #{reinforce_forward_batch.1} parent=5 // pred_region
        %s594 = ssub.s32 %s12, 2
        // Predicated region
        $region99: #{reinforce_forward_batch.1} parent=97 // pred_check
          %p595 = pneg %p201
        $region100: #{reinforce_forward_batch.1} parent=97 // pred_check_branch
          %597 = sbr.rel (%p595) target = $region102
        $region101: #{reinforce_forward_batch.1} parent=97 // pred_region
          %p598 = scmp.lt.s32.totalorder %s23, 1
          %s599 = scalar_select %p598, %s23, 1
          %s600 = smul.addr %s599, 4
          %s601 = smul.addr %s600, 8
          %s602 = scalar_lea.vmem %s6, %s601
        $region102: #{reinforce_forward_batch.1} parent=97 // pred_fallthru
          _
      $region98: #{reinforce_forward_batch.1} parent=5 // pred_fallthru
        _
    $region6: #{reinforce_forward_batch.1} parent=1 // loop_footer
      %s16 = sadd.s32 1, %s12
    $region7: #{reinforce_forward_batch.1} parent=1 // loop_footer_branch
      %11 = sbr.rel target = $region3
    $region8: #{reinforce_forward_batch.1} parent=1 // loop_exit
      _

</llo_original>
